<compile_context>
chip_gen: v7x
topology: tpu7x:2x2x1
jax: 0.10.0
libtpu: 0.0.40
codegen_flags: <defaults>
</compile_context>

<pallas_src>
import jax
import jax.numpy as jnp
from jax import lax
from jax.experimental import pallas as pl
from jax.experimental.pallas import tpu as pltpu


def _choose_packing(N, D):
    """Fold P consecutive rows into the 128-lane axis when it is a free reshape."""
    if D < 128 and 128 % D == 0 and N % (128 // D) == 0:
        return 128 // D
    # TODO(synk): for D that does not divide 128 (e.g. 24, 96) pad the feature dim
    # once to the next divisor of 128 so phase-2 stores stay lane-dense.
    return 1


def batch_norm_flow_direct(x, log_gamma, beta, *, eps=1e-5,
                           max_tile_rows=4096,
                           fastpath_vmem_bytes=4 * 1024 * 1024):
    """BatchNormFlow forward (mode='direct', training=True, momentum=0.0)."""
    B, S, D = x.shape
    N = B * S
    eps = float(eps)
    inv_n = 1.0 / float(N)

    # ---- lane-dense packing: pure metadata reshape, no data movement -----------
    P = _choose_packing(N, D)
    Dp = P * D
    Np = N // P
    xp = x.reshape(Np, Dp)

    lg32 = log_gamma.astype(jnp.float32)
    bt32 = beta.astype(jnp.float32)
    lg_packed = jnp.tile(lg32, P).reshape(1, Dp)   # lane l = p*D + j  ->  feature j
    bt_packed = jnp.tile(bt32, P).reshape(1, Dp)

    def _fold_groups(v):
        # (1, Dp) partial sums -> per-feature totals replicated into every lane
        # group.  Circular rolls by multiples of D over the Dp-wide lane axis cycle
        # through all P groups (only used when P > 1, i.e. Dp == 128).
        out = v
        for k in range(1, P):
            out = out + pltpu.roll(v, shift=k * D, axis=1)
        return out

    # ------------------------------------------------------------- fast path ----
    # Whole packed x fits comfortably in VMEM: one kernel, two HBM passes.
    x_f32_bytes = Np * Dp * 4
    use_fast = x_f32_bytes <= fastpath_vmem_bytes

    if use_fast:
        def _fused_kernel(x_ref, lg_ref, bt_ref, y_ref, psum_ref, psq_ref):
            xv = x_ref[...].astype(jnp.float32)
            s = jnp.sum(xv, axis=0, keepdims=True)
            q = jnp.sum(xv * xv, axis=0, keepdims=True)
            psum_ref[...] = s
            psq_ref[...] = q
            ts = _fold_groups(s)
            tq = _fold_groups(q)
            mean = ts * inv_n
            var = jnp.maximum(tq * inv_n - mean * mean, 0.0) + eps
            scale = jnp.exp(lg_ref[...]) * lax.rsqrt(var)
            shift = bt_ref[...] - scale * mean
            y_ref[...] = (xv * scale + shift).astype(y_ref.dtype)

        yp, psum, psq = pl.pallas_call(
            _fused_kernel,
            out_shape=(
                jax.ShapeDtypeStruct((Np, Dp), x.dtype),
                jax.ShapeDtypeStruct((1, Dp), jnp.float32),
                jax.ShapeDtypeStruct((1, Dp), jnp.float32),
            ),
            compiler_params=pltpu.CompilerParams(
                vmem_limit_bytes=32 * 1024 * 1024),
        )(xp, lg_packed, bt_packed)

    else:
        # ----------------------------------------------------- streaming path ---
        itemsize = jnp.dtype(x.dtype).itemsize
        SUB = 8 if itemsize >= 4 else (16 if itemsize == 2 else 32)

        target_rows = max(SUB, min(int(max_tile_rows),
                                   (2 * 1024 * 1024) // (Dp * 4)))  # ~2 MiB tiles
        num_tiles = -(-Np // target_rows)
        TN = (-(-Np // num_tiles) + SUB - 1) // SUB * SUB
        num_tiles = -(-Np // TN)

        # Shard the reduction over (up to) 2 TensorCores; serial no-op on 1-TC chips.
        C = 2 if num_tiles >= 2 else 1
        TPC = -(-num_tiles // C)
        last_block = num_tiles - 1
        ACC = 8                                    # one full f32 vreg of rows

        # ---- phase 1: per-packed-column sum / sum-of-squares -------------------
        def _stats_kernel(x_ref, psum_ref, psq_ref):
            c = pl.program_id(0)
            t = pl.program_id(1)

            @pl.when(t == 0)
            def _():
                psum_ref[...] = jnp.zeros_like(psum_ref)
                psq_ref[...] = jnp.zeros_like(psq_ref)

            row0 = (c * TPC + t) * TN              # logical (unclamped) row offset
            xv = x_ref[...].astype(jnp.float32)
            rows = lax.broadcasted_iota(jnp.int32, (TN, Dp), 0) + row0
            xv = jnp.where(rows < Np, xv, 0.0)     # ragged / duplicated tail -> 0
            x2 = xv * xv
            psum_ref[...] += jnp.sum(xv.reshape(TN // 8, 8, Dp), axis=0)
            psq_ref[...] += jnp.sum(x2.reshape(TN // 8, 8, Dp), axis=0)

        def _x_map(c, t):
            idx = c * TPC + t
            return (jnp.minimum(idx, last_block), 0)   # clamp fully-OOB tiles

        psum, psq = pl.pallas_call(
            _stats_kernel,
            grid=(C, TPC),
            in_specs=[pl.BlockSpec((TN, Dp), _x_map)],
            out_specs=(
                pl.BlockSpec((ACC, Dp), lambda c, t: (c, 0)),
                pl.BlockSpec((ACC, Dp), lambda c, t: (c, 0)),
            ),
            out_shape=(
                jax.ShapeDtypeStruct((C * ACC, Dp), jnp.float32),
                jax.ShapeDtypeStruct((C * ACC, Dp), jnp.float32),
            ),
            compiler_params=pltpu.CompilerParams(
                dimension_semantics=("parallel", "arbitrary"),
                vmem_limit_bytes=32 * 1024 * 1024),
        )(xp)

        # ---- phase 2: y = x * scale + shift (scale/shift derived in-kernel) ----
        def _normalize_kernel(x_ref, psum_ref, psq_ref, lg_ref, bt_ref, y_ref):
            s = jnp.sum(psum_ref[...], axis=0, keepdims=True)
            q = jnp.sum(psq_ref[...], axis=0, keepdims=True)
            ts = _fold_groups(s)
            tq = _fold_groups(q)
            mean = ts * inv_n
            var = jnp.maximum(tq * inv_n - mean * mean, 0.0) + eps
            scale = jnp.exp(lg_ref[...]) * lax.rsqrt(var)   # EUP filler, per step
            shift = bt_ref[...] - scale * mean
            xv = x_ref[...].astype(jnp.float32)
            y_ref[...] = (xv * scale + shift).astype(y_ref.dtype)

        yp = pl.pallas_call(
            _normalize_kernel,
            grid=(num_tiles,),
            in_specs=[
                pl.BlockSpec((TN, Dp), lambda i: (i, 0)),
                pl.BlockSpec((C * ACC, Dp), lambda i: (0, 0)),
                pl.BlockSpec((C * ACC, Dp), lambda i: (0, 0)),
                pl.BlockSpec((1, Dp), lambda i: (0, 0)),
                pl.BlockSpec((1, Dp), lambda i: (0, 0)),
            ],
            out_specs=pl.BlockSpec((TN, Dp), lambda i: (i, 0)),
            out_shape=jax.ShapeDtypeStruct((Np, Dp), x.dtype),
            compiler_params=pltpu.CompilerParams(
                dimension_semantics=("parallel",),
                vmem_limit_bytes=32 * 1024 * 1024),
        )(xp, psum, psq, lg_packed, bt_packed)

    y = yp.reshape(B, S, D)

    # ---- tiny per-feature stats / logdet (off the kernel critical path) --------
    sum_f = psum.sum(axis=0).reshape(P, D).sum(axis=0)
    sq_f = psq.sum(axis=0).reshape(P, D).sum(axis=0)
    mean = sum_f * inv_n
    # NOTE: single-pass E[x^2]-mean^2 (f32-accumulated, clamped at 0).  Can lose
    # precision vs. PyTorch's centered formulation when |mean| >> std.
    var = jnp.maximum(sq_f * inv_n - mean * mean, 0.0) + eps
    logdet = jnp.sum(lg32 - 0.5 * jnp.log(var), axis=-1, keepdims=True)
    # momentum = 0.0  =>  running_mean = batch_mean, running_var = batch_var
    return y, logdet, mean, var


def _reference(x, log_gamma, beta, eps=1e-5):
    mean = x.mean(axis=(0, 1))
    var = ((x - mean) ** 2).mean(axis=(0, 1)) + eps
    y = jnp.exp(log_gamma) * (x - mean) / jnp.sqrt(var) + beta
    logdet = jnp.sum(log_gamma - 0.5 * jnp.log(var), axis=-1, keepdims=True)
    return y, logdet, mean, var


if __name__ == "__main__":
    key = jax.random.PRNGKey(0)
    kx, kg, kb = jax.random.split(key, 3)

    # Shapes consistent with the module: batch=2, seq=8, num_inputs=32.
    B, S, D = 2, 8, 32
    x = jax.random.normal(kx, (B, S, D), dtype=jnp.float32)
    log_gamma = 0.1 * jax.random.normal(kg, (D,), dtype=jnp.float32)
    beta = 0.1 * jax.random.normal(kb, (D,), dtype=jnp.float32)

    # 1) small problem -> VMEM-resident fused fast path
    y, logdet, mean, var = batch_norm_flow_direct(x, log_gamma, beta, eps=1e-5)
    jax.block_until_ready((y, logdet, mean, var))
    y_r, ld_r, m_r, v_r = _reference(x, log_gamma, beta)
    assert jnp.allclose(y, y_r, atol=1e-5, rtol=1e-5)
    assert jnp.allclose(logdet, ld_r, atol=1e-5, rtol=1e-5)
    assert jnp.allclose(mean, m_r, atol=1e-5, rtol=1e-5)
    assert jnp.allclose(var, v_r, atol=1e-5, rtol=1e-5)

    # 2) exercise the tiled two-phase streaming path (ragged last tile, 2-way
    #    reduction split, partial output block) on a slightly larger problem.
    B2, S2 = 5, 200                      # N=1000 -> packed Np=250 (not a tile multiple)
    x2 = jax.random.normal(kx, (B2, S2, D), dtype=jnp.float32)
    y2, logdet2, mean2, var2 = batch_norm_flow_direct(
        x2, log_gamma, beta, eps=1e-5, fastpath_vmem_bytes=0, max_tile_rows=64)
    jax.block_until_ready((y2, logdet2, mean2, var2))
    y2_r, ld2_r, m2_r, v2_r = _reference(x2, log_gamma, beta)
    assert jnp.allclose(y2, y2_r, atol=1e-5, rtol=1e-5)
    assert jnp.allclose(logdet2, ld2_r, atol=1e-5, rtol=1e-5)
    assert jnp.allclose(mean2, m2_r, atol=1e-5, rtol=1e-5)
    assert jnp.allclose(var2, v2_r, atol=1e-5, rtol=1e-5)

    print("KERNEL_OK")
</pallas_src>

<mosaic_0001>
module attributes {stable_mosaic.version = 11 : i64} {
  func.func @_fused_kernel(%arg0: memref<4x128xf32, #tpu.memory_space<vmem>>, %arg1: memref<1x128xf32, #tpu.memory_space<vmem>>, %arg2: memref<1x128xf32, #tpu.memory_space<vmem>>, %arg3: memref<4x128xf32, #tpu.memory_space<vmem>>, %arg4: memref<1x128xf32, #tpu.memory_space<vmem>>, %arg5: memref<1x128xf32, #tpu.memory_space<vmem>>) attributes {dimension_semantics = [], scalar_prefetch = 0 : i64, scratch_operands = 0 : i64, tpu.core_type = #tpu.core_type<tc>} {
    %c0 = arith.constant 0 : index
    %c0_0 = arith.constant 0 : index
    %0 = vector.load %arg0[%c0, %c0_0] : memref<4x128xf32, #tpu.memory_space<vmem>>, vector<4x128xf32>
    %cst = arith.constant dense<0.000000e+00> : vector<128xf32>
    %1 = vector.multi_reduction <add>, %0, %cst [0] : vector<4x128xf32> to vector<128xf32>
    %2 = vector.shape_cast %1 : vector<128xf32> to vector<1x128xf32>
    %3 = arith.mulf %0, %0 : vector<4x128xf32>
    %cst_1 = arith.constant dense<0.000000e+00> : vector<128xf32>
    %4 = vector.multi_reduction <add>, %3, %cst_1 [0] : vector<4x128xf32> to vector<128xf32>
    %5 = vector.shape_cast %4 : vector<128xf32> to vector<1x128xf32>
    %c0_2 = arith.constant 0 : index
    %c0_3 = arith.constant 0 : index
    %6 = vector.load %arg4[%c0_2, %c0_3] : memref<1x128xf32, #tpu.memory_space<vmem>>, vector<1x128xf32>
    tpu.vector_store %arg4[%c0_2, %c0_3], %2 {strides = array<i32>} : memref<1x128xf32, #tpu.memory_space<vmem>>, vector<1x128xf32>,
    %c0_4 = arith.constant 0 : index
    %c0_5 = arith.constant 0 : index
    %7 = vector.load %arg5[%c0_4, %c0_5] : memref<1x128xf32, #tpu.memory_space<vmem>>, vector<1x128xf32>
    tpu.vector_store %arg5[%c0_4, %c0_5], %5 {strides = array<i32>} : memref<1x128xf32, #tpu.memory_space<vmem>>, vector<1x128xf32>,
    %c32_i32 = arith.constant 32 : i32
    %8 = tpu.dynamic_rotate %2 by %c32_i32 dim 1 : vector<1x128xf32>, i32 -> vector<1x128xf32>
    %9 = arith.addf %2, %8 : vector<1x128xf32>
    %c64_i32 = arith.constant 64 : i32
    %10 = tpu.dynamic_rotate %2 by %c64_i32 dim 1 : vector<1x128xf32>, i32 -> vector<1x128xf32>
    %11 = arith.addf %9, %10 : vector<1x128xf32>
    %c96_i32 = arith.constant 96 : i32
    %12 = tpu.dynamic_rotate %2 by %c96_i32 dim 1 : vector<1x128xf32>, i32 -> vector<1x128xf32>
    %13 = arith.addf %11, %12 : vector<1x128xf32>
    %c32_i32_6 = arith.constant 32 : i32
    %14 = tpu.dynamic_rotate %5 by %c32_i32_6 dim 1 : vector<1x128xf32>, i32 -> vector<1x128xf32>
    %15 = arith.addf %5, %14 : vector<1x128xf32>
    %c64_i32_7 = arith.constant 64 : i32
    %16 = tpu.dynamic_rotate %5 by %c64_i32_7 dim 1 : vector<1x128xf32>, i32 -> vector<1x128xf32>
    %17 = arith.addf %15, %16 : vector<1x128xf32>
    %c96_i32_8 = arith.constant 96 : i32
    %18 = tpu.dynamic_rotate %5 by %c96_i32_8 dim 1 : vector<1x128xf32>, i32 -> vector<1x128xf32>
    %19 = arith.addf %17, %18 : vector<1x128xf32>
    %cst_9 = arith.constant 6.250000e-02 : f32
    %20 = vector.broadcast %cst_9 : f32 to vector<1x128xf32>
    %21 = arith.mulf %13, %20 : vector<1x128xf32>
    %cst_10 = arith.constant 6.250000e-02 : f32
    %22 = vector.broadcast %cst_10 : f32 to vector<1x128xf32>
    %23 = arith.mulf %19, %22 : vector<1x128xf32>
    %24 = arith.mulf %21, %21 : vector<1x128xf32>
    %25 = arith.subf %23, %24 : vector<1x128xf32>
    %cst_11 = arith.constant 0.000000e+00 : f32
    %26 = vector.broadcast %cst_11 : f32 to vector<1x128xf32>
    %27 = arith.maximumf %25, %26 : vector<1x128xf32>
    %cst_12 = arith.constant 9.99999974E-6 : f32
    %28 = vector.broadcast %cst_12 : f32 to vector<1x128xf32>
    %29 = arith.addf %27, %28 : vector<1x128xf32>
    %c0_13 = arith.constant 0 : index
    %c0_14 = arith.constant 0 : index
    %30 = vector.load %arg1[%c0_13, %c0_14] : memref<1x128xf32, #tpu.memory_space<vmem>>, vector<1x128xf32>
    %31 = math.exp %30 : vector<1x128xf32>
    %32 = math.rsqrt %29 : vector<1x128xf32>
    %33 = arith.mulf %31, %32 : vector<1x128xf32>
    %c0_15 = arith.constant 0 : index
    %c0_16 = arith.constant 0 : index
    %34 = vector.load %arg2[%c0_15, %c0_16] : memref<1x128xf32, #tpu.memory_space<vmem>>, vector<1x128xf32>
    %35 = arith.mulf %33, %21 : vector<1x128xf32>
    %36 = arith.subf %34, %35 : vector<1x128xf32>
    %37 = vector.broadcast %33 : vector<1x128xf32> to vector<4x128xf32>
    %38 = arith.mulf %0, %37 : vector<4x128xf32>
    %39 = vector.broadcast %36 : vector<1x128xf32> to vector<4x128xf32>
    %40 = arith.addf %38, %39 : vector<4x128xf32>
    %c0_17 = arith.constant 0 : index
    %c0_18 = arith.constant 0 : index
    %41 = vector.load %arg3[%c0_17, %c0_18] : memref<4x128xf32, #tpu.memory_space<vmem>>, vector<4x128xf32>
    tpu.vector_store %arg3[%c0_17, %c0_18], %40 {strides = array<i32>} : memref<4x128xf32, #tpu.memory_space<vmem>>, vector<4x128xf32>,
    return
  }
}

</mosaic_0001>

<llo_original>
// kernel: tpu_custom_call.1
$region0: #{tpu_custom_call.1}
  #allocation0 [shape = 'u32[]', space=smem, size = 0x4, offset = 0x4, fixed_abs, tag = 'smem constant byte address 0x4 - core index']
  #allocation1 [shape = 'u32[144,128]{1,0:T(1,128)}', space=vmem, size = 0x12000, scoped, tag = 'internal scratch']
  %s0 = inlined_call_operand.hbm [shape: f32[4,128], index: 0, kind: input, shape index: {}]
  %s1 = inlined_call_operand.vmem [shape: f32[1,128], index: 1, kind: input, shape index: {}]
  %s2 = inlined_call_operand.vmem [shape: f32[1,128], index: 2, kind: input, shape index: {}]
  %s3 = inlined_call_operand.hbm [shape: f32[4,128], index: 3, kind: output, shape index: {0}]
  %s4 = inlined_call_operand.hbm [shape: f32[1,128], index: 4, kind: output, shape index: {1}]
  %s5 = inlined_call_operand.hbm [shape: f32[1,128], index: 5, kind: output, shape index: {2}]
  %6 = xla_tuple %s3, %s4, %s5
  %s7 = sld [smem:[#allocation0]]
  $region42: #{tpu_custom_call.1} parent=0
    _
  %s9 = ssub.s32 1, %s7
  %s10 = scalar_select 0, %s9, %s7
  $region1: #{tpu_custom_call.1} parent=0
    #allocation2 [shape = 'u8[2048]{0}', space=vmem, size = 0x800, scoped, tag = 'input window, operand 0, single buffered']
    #allocation3 [shape = 's32[1]{0}', space=sflag, size = 0x4, scoped, tag = 'scoped memory for tpu_custom_call.1']
    #allocation4 [shape = 's32[1]{0}', space=sflag, size = 0x4, scoped, tag = 'scoped memory for tpu_custom_call.1']
    #allocation5 [shape = 'u8[2048]{0}', space=vmem, size = 0x800, scoped, tag = 'output window, operand 0, single buffered']
    #allocation6 [shape = 'u8[512]{0}', space=vmem, size = 0x400, scoped, tag = 'output window, operand 1, single buffered']
    #allocation7 [shape = 's32[1]{0}', space=sflag, size = 0x4, scoped, tag = 'scoped memory for tpu_custom_call.1']
    #allocation8 [shape = 'u8[512]{0}', space=vmem, size = 0x400, scoped, tag = 'output window, operand 2, single buffered']
    %11 = vsyncpa [#allocation3], 0
    %12 = vsyncpa [#allocation4], 0
    %13 = vsyncpa [#allocation7], 0
    // Predicated region
    $region2: #{tpu_custom_call.1} parent=1 // pred_check
      _
    $region3: #{tpu_custom_call.1} parent=1 // pred_check_branch
      %15 = sbr.rel (0) target = $region5
    $region4: #{tpu_custom_call.1} parent=1 // pred_region
      %s17 = ssub.s32 64, 64
      %18 = vsyncadd [#allocation3], %s17
      %s20 = sshll.u32 [#allocation2], 4
      %s21 = int_to_ptr.vmem [resolvable:$true] %s20
      %23 = dma.hbm_to_vmem [thread:$0]  %s0, 64, %s21, [#allocation3]
    $region5: #{tpu_custom_call.1} parent=1 // pred_fallthru
      _
    // Predicated region
    $region6: #{tpu_custom_call.1} parent=1 // pred_check
      _
    $region7: #{tpu_custom_call.1} parent=1 // pred_check_branch
      %25 = sbr.rel (0) target = $region9
    $region8: #{tpu_custom_call.1} parent=1 // pred_region
      _
    $region9: #{tpu_custom_call.1} parent=1 // pred_fallthru
      _
    // Predicated region
    $region10: #{tpu_custom_call.1} parent=1 // pred_check
      _
    $region11: #{tpu_custom_call.1} parent=1 // pred_check_branch
      %27 = sbr.rel (0) target = $region13
    $region12: #{tpu_custom_call.1} parent=1 // pred_region
      _
    $region13: #{tpu_custom_call.1} parent=1 // pred_fallthru
      _
    // Predicated region
    $region14: #{tpu_custom_call.1} parent=1 // pred_check
      _
    $region15: #{tpu_custom_call.1} parent=1 // pred_check_branch
      %29 = sbr.rel (0) target = $region17
    $region16: #{tpu_custom_call.1} parent=1 // pred_region
      %30 = dma.done [#allocation3], 64
    $region17: #{tpu_custom_call.1} parent=1 // pred_fallthru
      _
    %v31 = vld [vmem:[#allocation2] sm:$0xf]
    %vm32 = vcmask 1043456
    %v33 = vsel %vm32, %v31, 0.0
    %v34 = vrot.slane %v33, 4
    %v35 = vadd.f32 %v33, %v34
    %v36 = vrot.slane %v35, 2
    %v37 = vadd.f32 %v35, %v36
    %v38 = vrot.slane %v37, 1
    %v39 = vadd.f32 %v37, %v38
    %v40 = vmul.f32 %v31, %v31
    %v41 = vsel %vm32, %v40, 0.0
    %v42 = vrot.slane %v41, 4
    %v43 = vadd.f32 %v41, %v42
    %v44 = vrot.slane %v43, 2
    %v45 = vadd.f32 %v43, %v44
    %v46 = vrot.slane %v45, 1
    %v47 = vadd.f32 %v45, %v46
    %48 = vst [vmem:[#allocation6] sm:$0x1] %v39
    %49 = vst [vmem:[#allocation8] sm:$0x1] %v47
    %50 = vrot.lane.b32.xlu0 %v39, 32
    %v51 = vpop.permute.xlu0 %50
    %v52 = vadd.f32 %v39, %v51
    %53 = vrot.lane.b32.xlu0 %v39, 64
    %v54 = vpop.permute.xlu0 %53
    %v55 = vadd.f32 %v52, %v54
    %56 = vrot.lane.b32.xlu0 %v39, 96
    %v57 = vpop.permute.xlu0 %56
    %v58 = vadd.f32 %v55, %v57
    %59 = vrot.lane.b32.xlu0 %v47, 32
    %v60 = vpop.permute.xlu0 %59
    %v61 = vadd.f32 %v47, %v60
    %62 = vrot.lane.b32.xlu0 %v47, 64
    %v63 = vpop.permute.xlu0 %62
    %v64 = vadd.f32 %v61, %v63
    %65 = vrot.lane.b32.xlu0 %v47, 96
    %v66 = vpop.permute.xlu0 %65
    %v67 = vadd.f32 %v64, %v66
    %v68 = vmul.f32 %v58, 0.0625
    %v69 = vmul.f32 %v67, 0.0625
    %v70 = vmul.f32 %v68, %v68
    %v71 = vsub.f32 %v69, %v70
    %v72 = vmax.f32 %v71, 0.0
    %v73 = vadd.f32 %v72, 1e-05
    %v74 = vld [vmem:[%s1] sm:$0x1]
    %v75 = vmul.f32 %v74, 1.442695
    %v76 = vpow.pop %v75
    %v77 = vrsqrt.pop %v73
    %v78 = vmul.f32 %v76, %v77
    %v79 = vld [vmem:[%s2] sm:$0x1]
    %v80 = vmul.f32 %v78, %v68
    %v81 = vsub.f32 %v79, %v80
    %v83 = vlaneseq
    %v84 = vshrl.u32 %v83, 7
    %v85 = vsub.s32 0, %v84
    %v86 = vrot.slane %v78, %v85
    %v88 = vmul.f32 %v31, %v86
    %v90 = vlaneseq
    %v91 = vshrl.u32 %v90, 7
    %v92 = vsub.s32 0, %v91
    %v93 = vrot.slane %v81, %v92
    %v95 = vadd.f32 %v88, %v93
    %96 = vst [vmem:[#allocation5] sm:$0xf] %v95
    // Predicated region
    $region18: #{tpu_custom_call.1} parent=1 // pred_check
      _
    $region19: #{tpu_custom_call.1} parent=1 // pred_check_branch
      %98 = sbr.rel (0) target = $region21
    $region20: #{tpu_custom_call.1} parent=1 // pred_region
      %s100 = ssub.s32 64, 64
      %101 = vsyncadd [#allocation4], %s100
      %s103 = sshll.u32 [#allocation5], 4
      %s104 = int_to_ptr.vmem [resolvable:$true] %s103
      %106 = dma.vmem_to_hbm [thread:$0]  %s104, 64, %s3, [#allocation4]
    $region21: #{tpu_custom_call.1} parent=1 // pred_fallthru
      _
    // Predicated region
    $region22: #{tpu_custom_call.1} parent=1 // pred_check
      _
    $region23: #{tpu_custom_call.1} parent=1 // pred_check_branch
      %108 = sbr.rel (0) target = $region25
    $region24: #{tpu_custom_call.1} parent=1 // pred_region
      %s110 = ssub.s32 16, 16
      %111 = vsyncadd [#allocation7], %s110
      %s113 = sshll.u32 [#allocation6], 4
      %s114 = int_to_ptr.vmem [resolvable:$true] %s113
      %116 = dma.vmem_to_hbm [thread:$0]  %s114, 16, %s4, [#allocation7]
    $region25: #{tpu_custom_call.1} parent=1 // pred_fallthru
      _
    // Predicated region
    $region26: #{tpu_custom_call.1} parent=1 // pred_check
      _
    $region27: #{tpu_custom_call.1} parent=1 // pred_check_branch
      %118 = sbr.rel (0) target = $region29
    $region28: #{tpu_custom_call.1} parent=1 // pred_region
      %s120 = ssub.s32 16, 16
      %121 = vsyncadd [#allocation7], %s120
      %s123 = sshll.u32 [#allocation8], 4
      %s124 = int_to_ptr.vmem [resolvable:$true] %s123
      %126 = dma.vmem_to_hbm [thread:$0]  %s124, 16, %s5, [#allocation7]
    $region29: #{tpu_custom_call.1} parent=1 // pred_fallthru
      _
    // Predicated region
    $region30: #{tpu_custom_call.1} parent=1 // pred_check
      _
    $region31: #{tpu_custom_call.1} parent=1 // pred_check_branch
      %128 = sbr.rel (0) target = $region33
    $region32: #{tpu_custom_call.1} parent=1 // pred_region
      %129 = dma.done [#allocation4], 64
    $region33: #{tpu_custom_call.1} parent=1 // pred_fallthru
      _
    // Predicated region
    $region34: #{tpu_custom_call.1} parent=1 // pred_check
      _
    $region35: #{tpu_custom_call.1} parent=1 // pred_check_branch
      %131 = sbr.rel (0) target = $region37
    $region36: #{tpu_custom_call.1} parent=1 // pred_region
      %132 = dma.done [#allocation7], 16
    $region37: #{tpu_custom_call.1} parent=1 // pred_fallthru
      _
    // Predicated region
    $region38: #{tpu_custom_call.1} parent=1 // pred_check
      _
    $region39: #{tpu_custom_call.1} parent=1 // pred_check_branch
      %134 = sbr.rel (0) target = $region41
    $region40: #{tpu_custom_call.1} parent=1 // pred_region
      %135 = dma.done [#allocation7], 16
    $region41: #{tpu_custom_call.1} parent=1 // pred_fallthru
      _
    %136 = vsyncpa [#allocation3], 1
    %137 = vsyncpa [#allocation4], 1
    %138 = vsyncpa [#allocation7], 1

</llo_original>
